<compile_context>
chip_gen: v7x
topology: tpu7x:2x2x1
jax: 0.10.0
libtpu: 0.0.40
codegen_flags: <defaults>
</compile_context>

<pallas_src>
import functools

import jax
import jax.numpy as jnp
from jax import lax
from jax.experimental import pallas as pl
from jax.experimental.pallas import tpu as pltpu

# Tabulated 3x3 smoothing filter from ImageSmoothLayer.__init__ (corner / edge / center).
_A = 0.0751
_B = 0.1238
_C = 0.2042
_SMOOTH_W = [[_A, _B, _A], [_B, _C, _B], [_A, _B, _A]]

# Block sizing is budgeted in f32 terms (in-kernel temporaries are f32 for any input dtype).
_TARGET_F32_BLOCK_BYTES = 4 << 20    # ~4 MiB of f32 work per grid step (amortizes ~0.35us/step)
_VMEM_WORK_BUDGET_BYTES = 48 << 20   # cap on estimated live VMEM (fits v7x's 64 MiB physical)
_VMEM_LIMIT_BYTES = 56 << 20         # raised scoped limit when blocks are large
_MIN_GRID_STEPS = 8                  # keep pipelining / core sharding engaged


def _prev_next(v, axis, use_roll):
    """Raw previous/next neighbours of `v` along `axis`.

    Wrap-around (roll) or edge-duplication (concat fallback) values at border positions are
    junk here; the caller patches them with the reflection mask.
    """
    n = v.shape[axis]
    if use_roll:
        # XLU rotate: no VMEM temporaries, stays off the vector-store slot.
        prev = pltpu.roll(v, shift=1, axis=axis)       # prev[j] = v[j-1]  (wraps at j=0)
        nxt = pltpu.roll(v, shift=n - 1, axis=axis)    # nxt[j]  = v[j+1]  (wraps at j=n-1)
    else:
        # Unaligned (sub-vreg) extents: static-slice concat fallback.
        prev = jnp.concatenate(
            [lax.slice_in_dim(v, 0, 1, axis=axis), lax.slice_in_dim(v, 0, n - 1, axis=axis)],
            axis=axis)
        nxt = jnp.concatenate(
            [lax.slice_in_dim(v, 1, n, axis=axis), lax.slice_in_dim(v, n - 1, n, axis=axis)],
            axis=axis)
    return prev, nxt


def _smooth_kernel(x_ref, o_ref, *, plane_w):
    """One grid step = TB packed rows of planes; each row holds k = Wp // plane_w planes
    side by side along the lane axis.

    x_ref / o_ref : VMEM (TB, H, Wp).  ReflectionPad2d(1) is fused: neighbours are built with
    rolls (or slice-concats on unaligned tiny shapes) and the reflected border row/column —
    as well as roll wrap-around and cross-plane bleed at lane-packing boundaries — is patched
    with a broadcasted-iota border mask.
    """
    tb, H, Wp = x_ref.shape
    # Hardware rotates only when minor dims are vreg-aligned (f32 tile = (8, 128)).
    use_roll = (H % 8 == 0) and (Wp % 128 == 0)

    x = x_ref[...].astype(jnp.float32)
    # TODO(synk): for bf16 inputs on v6e/v7x the horizontal passes could stay in bf16 to halve
    # vreg/VMEM pressure; kept in f32 here for accuracy/simplicity.

    # ---- horizontal (lane axis) ---------------------------------------------------------------
    col = lax.broadcasted_iota(jnp.int32, (tb, H, Wp), dimension=2) % plane_w
    left_nb, right_nb = _prev_next(x, axis=2, use_roll=use_roll)
    x_left = jnp.where(col == 0, right_nb, left_nb)               # reflect: x[-1] -> x[1]
    x_right = jnp.where(col == plane_w - 1, left_nb, right_nb)    # reflect: x[W]  -> x[W-2]

    s = x_left + x_right
    h_a = _A * s + _B * x    # horizontal [a, b, a] pass
    h_b = _B * s + _C * x    # horizontal [b, c, b] pass

    # ---- vertical (sublane axis) ----------------------------------------------------------------
    row = lax.broadcasted_iota(jnp.int32, (tb, H, Wp), dimension=1)
    up_nb, dn_nb = _prev_next(h_a, axis=1, use_roll=use_roll)
    h_up = jnp.where(row == 0, dn_nb, up_nb)        # reflect: row -1 -> row 1
    h_dn = jnp.where(row == H - 1, up_nb, dn_nb)    # reflect: row H  -> row H-2

    o_ref[...] = (h_up + h_b + h_dn).astype(o_ref.dtype)


def image_smooth(x, flag):
    """JAX/Pallas equivalent of ImageSmoothLayer(flag).forward(x).

    Accepts 2D (H,W), 3D (N,H,W) or 4D (N,C,H,W) input, mirroring the PyTorch dispatch.  For 4D
    input the channel-diagonal smooth_kernel_K (flag == C) is exactly a per-channel 3x3 conv.
    """
    orig_dim = x.ndim
    if orig_dim == 2:
        xin = x[None, None]
    elif orig_dim == 3:
        xin = x[:, None]
    else:
        assert x.shape[1] == flag, "4D input requires flag == channel count (diagonal kernel_K)"
        xin = x

    N, C, H, W = xin.shape
    assert H >= 2 and W >= 2, "ReflectionPad2d(1) requires H >= 2 and W >= 2"
    NC = N * C

    # ---- lane packing for narrow images: put k planes side by side along the lane axis --------
    k = 1
    if W < 128:
        for cand in range(min(128 // W, NC), 0, -1):
            if NC % cand == 0:
                k = cand
                break
    NP = NC // k
    Wp = k * W
    xf = xin.reshape(NC, H, W)
    if k > 1:
        xf = xf.reshape(NP, k, H, W).transpose(0, 2, 1, 3).reshape(NP, H, Wp)

    # ---- block sizing: budget in f32 terms (kernel temporaries are f32) ------------------------
    io_bytes = jnp.dtype(x.dtype).itemsize
    plane_f32_bytes = H * Wp * 4
    plane_io_bytes = H * Wp * io_bytes
    # Estimated live VMEM per plane: double-buffered in + out blocks plus ~8 f32 temporaries.
    plane_peak_bytes = 4 * plane_io_bytes + 8 * plane_f32_bytes
    tb = max(1, min(_TARGET_F32_BLOCK_BYTES // plane_f32_bytes,
                    _VMEM_WORK_BUDGET_BYTES // plane_peak_bytes))
    tb = int(min(tb, NP, max(1, pl.cdiv(NP, _MIN_GRID_STEPS))))
    grid = (pl.cdiv(NP, tb),)
    # TODO(synk): a single plane too large for one block needs a row-tiling grid axis with a
    # 2-row halo (overlapping blocks); not needed for pyramid-scale images.

    cp_kwargs = dict(dimension_semantics=("parallel",))  # plane axis is fully independent
    # TODO(synk): on 2-TC v7x, pltpu.CORE_PARALLEL on this axis would split it across TensorCores.
    if tb * plane_peak_bytes > (12 << 20):
        cp_kwargs["vmem_limit_bytes"] = _VMEM_LIMIT_BYTES

    out = pl.pallas_call(
        functools.partial(_smooth_kernel, plane_w=W),
        out_shape=jax.ShapeDtypeStruct((NP, H, Wp), x.dtype),
        grid=grid,
        in_specs=[pl.BlockSpec((tb, H, Wp), lambda i: (i, 0, 0))],
        out_specs=pl.BlockSpec((tb, H, Wp), lambda i: (i, 0, 0)),
        compiler_params=pltpu.CompilerParams(**cp_kwargs),
    )(xf)

    if k > 1:
        out = out.reshape(NP, H, k, W).transpose(0, 2, 1, 3)
    out = out.reshape(N, C, H, W)
    if orig_dim == 2:
        out = out[0, 0]
    elif orig_dim == 3:
        out = out[:, 0]
    return out


def _reference(x, flag):
    """Pure-JAX reference (jnp.pad reflect + 9-tap with tabulated weights)."""
    orig_dim = x.ndim
    if orig_dim == 2:
        xin = x[None, None]
    elif orig_dim == 3:
        xin = x[:, None]
    else:
        xin = x
    N, C, H, W = xin.shape
    xp = jnp.pad(xin, ((0, 0), (0, 0), (1, 1), (1, 1)), mode="reflect").astype(jnp.float32)
    w = jnp.asarray(_SMOOTH_W, dtype=jnp.float32)
    acc = jnp.zeros((N, C, H, W), jnp.float32)
    for ky in range(3):
        for kx in range(3):
            acc = acc + w[ky, kx] * xp[:, :, ky:ky + H, kx:kx + W]
    acc = acc.astype(x.dtype)
    if orig_dim == 2:
        acc = acc[0, 0]
    elif orig_dim == 3:
        acc = acc[:, 0]
    return acc


if __name__ == "__main__":
    key = jax.random.PRNGKey(0)

    # 4D case: batch=2, channels=4 (flag=4), spatial 16x16 -> lane-packed (k=8, Wp=128), roll path
    x4 = jax.random.normal(key, (2, 4, 16, 16), dtype=jnp.float32)
    y4 = jax.block_until_ready(image_smooth(x4, flag=4))
    r4 = _reference(x4, flag=4)
    assert y4.shape == (2, 4, 16, 16)
    assert jnp.allclose(y4, r4, atol=1e-5, rtol=1e-5)

    # 3D case: (N, H, W) -> single-channel kernel; partially packed (k=2, Wp=32), concat fallback
    x3 = jax.random.normal(jax.random.PRNGKey(1), (2, 16, 16), dtype=jnp.float32)
    y3 = jax.block_until_ready(image_smooth(x3, flag=4))
    r3 = _reference(x3, flag=4)
    assert y3.shape == (2, 16, 16)
    assert jnp.allclose(y3, r3, atol=1e-5, rtol=1e-5)

    # 2D case: (H, W) -> unpacked narrow plane, concat fallback
    x2 = jax.random.normal(jax.random.PRNGKey(2), (16, 16), dtype=jnp.float32)
    y2 = jax.block_until_ready(image_smooth(x2, flag=4))
    r2 = _reference(x2, flag=4)
    assert y2.shape == (16, 16)
    assert jnp.allclose(y2, r2, atol=1e-5, rtol=1e-5)

    # Lane-dense unpacked case (W = 128): multi-step grid, roll path, no packing
    x5 = jax.random.normal(jax.random.PRNGKey(3), (2, 2, 16, 128), dtype=jnp.float32)
    y5 = jax.block_until_ready(image_smooth(x5, flag=2))
    r5 = _reference(x5, flag=2)
    assert y5.shape == (2, 2, 16, 128)
    assert jnp.allclose(y5, r5, atol=1e-5, rtol=1e-5)

    print("KERNEL_OK")
</pallas_src>

<mosaic_0001>
module attributes {stable_mosaic.version = 11 : i64} {
  func.func @_smooth_kernel(%arg0: i32, %arg1: memref<1x16x128xf32, #tpu.memory_space<vmem>>, %arg2: memref<1x16x128xf32, #tpu.memory_space<vmem>>) attributes {dimension_semantics = [#tpu.dimension_semantics<parallel>], iteration_bounds = array<i64: 1>, scalar_prefetch = 0 : i64, scratch_operands = 0 : i64, tpu.core_type = #tpu.core_type<tc>, window_params = [{transform_indices = @transform_0, window_bounds = array<i64: 1, 16, 128>}, {transform_indices = @transform_1, window_bounds = array<i64: 1, 16, 128>}]} {
    %c0 = arith.constant 0 : index
    %c0_0 = arith.constant 0 : index
    %c0_1 = arith.constant 0 : index
    %0 = vector.load %arg1[%c0, %c0_0, %c0_1] : memref<1x16x128xf32, #tpu.memory_space<vmem>>, vector<1x16x128xf32>
    %1 = tpu.iota {dimensions = array<i32: 2>} : vector<1x16x128xi32>
    %c16_i32 = arith.constant 16 : i32
    %c0_i32 = arith.constant 0 : i32
    %2 = arith.cmpi eq, %c16_i32, %c0_i32 : i32
    %c1_i32 = arith.constant 1 : i32
    %3 = arith.select %2, %c1_i32, %c16_i32 : i32
    %4 = vector.broadcast %3 : i32 to vector<1x16x128xi32>
    %5 = arith.remsi %1, %4 : vector<1x16x128xi32>
    %c0_i32_2 = arith.constant 0 : i32
    %6 = vector.broadcast %c0_i32_2 : i32 to vector<1x16x128xi32>
    %7 = arith.cmpi ne, %5, %6 : vector<1x16x128xi32>
    %c0_i32_3 = arith.constant 0 : i32
    %8 = vector.broadcast %c0_i32_3 : i32 to vector<1x16x128xi32>
    %9 = arith.cmpi slt, %5, %8 : vector<1x16x128xi32>
    %c0_i32_4 = arith.constant 0 : i32
    %10 = arith.cmpi slt, %3, %c0_i32_4 : i32
    %11 = vector.broadcast %10 : i1 to vector<1x16x128xi1>
    %12 = vector.broadcast %11 : vector<1x16x128xi1> to vector<1x16x128xi1>
    %13 = arith.xori %9, %12 : vector<1x16x128xi1>
    %14 = arith.andi %13, %7 : vector<1x16x128xi1>
    %15 = vector.broadcast %3 : i32 to vector<1x16x128xi32>
    %16 = arith.addi %5, %15 : vector<1x16x128xi32>
    %17 = arith.select %14, %16, %5 : vector<1x16x128xi1>, vector<1x16x128xi32>
    %c1_i32_5 = arith.constant 1 : i32
    %18 = tpu.dynamic_rotate %0 by %c1_i32_5 dim 2 : vector<1x16x128xf32>, i32 -> vector<1x16x128xf32>
    %c127_i32 = arith.constant 127 : i32
    %19 = tpu.dynamic_rotate %0 by %c127_i32 dim 2 : vector<1x16x128xf32>, i32 -> vector<1x16x128xf32>
    %c0_i32_6 = arith.constant 0 : i32
    %20 = vector.broadcast %c0_i32_6 : i32 to vector<1x16x128xi32>
    %21 = arith.cmpi eq, %17, %20 : vector<1x16x128xi32>
    %22 = arith.select %21, %19, %18 : vector<1x16x128xi1>, vector<1x16x128xf32>
    %c15_i32 = arith.constant 15 : i32
    %23 = vector.broadcast %c15_i32 : i32 to vector<1x16x128xi32>
    %24 = arith.cmpi eq, %17, %23 : vector<1x16x128xi32>
    %25 = arith.select %24, %18, %19 : vector<1x16x128xi1>, vector<1x16x128xf32>
    %26 = arith.addf %22, %25 : vector<1x16x128xf32>
    %cst = arith.constant 7.510000e-02 : f32
    %27 = vector.broadcast %cst : f32 to vector<1x16x128xf32>
    %28 = arith.mulf %27, %26 : vector<1x16x128xf32>
    %cst_7 = arith.constant 1.238000e-01 : f32
    %29 = vector.broadcast %cst_7 : f32 to vector<1x16x128xf32>
    %30 = arith.mulf %29, %0 : vector<1x16x128xf32>
    %31 = arith.addf %28, %30 : vector<1x16x128xf32>
    %cst_8 = arith.constant 1.238000e-01 : f32
    %32 = vector.broadcast %cst_8 : f32 to vector<1x16x128xf32>
    %33 = arith.mulf %32, %26 : vector<1x16x128xf32>
    %cst_9 = arith.constant 2.042000e-01 : f32
    %34 = vector.broadcast %cst_9 : f32 to vector<1x16x128xf32>
    %35 = arith.mulf %34, %0 : vector<1x16x128xf32>
    %36 = arith.addf %33, %35 : vector<1x16x128xf32>
    %37 = tpu.iota {dimensions = array<i32: 1>} : vector<1x16x128xi32>
    %c1_i32_10 = arith.constant 1 : i32
    %38 = tpu.dynamic_rotate %31 by %c1_i32_10 dim 1 : vector<1x16x128xf32>, i32 -> vector<1x16x128xf32>
    %c15_i32_11 = arith.constant 15 : i32
    %39 = tpu.dynamic_rotate %31 by %c15_i32_11 dim 1 : vector<1x16x128xf32>, i32 -> vector<1x16x128xf32>
    %c0_i32_12 = arith.constant 0 : i32
    %40 = vector.broadcast %c0_i32_12 : i32 to vector<1x16x128xi32>
    %41 = arith.cmpi eq, %37, %40 : vector<1x16x128xi32>
    %42 = arith.select %41, %39, %38 : vector<1x16x128xi1>, vector<1x16x128xf32>
    %c15_i32_13 = arith.constant 15 : i32
    %43 = vector.broadcast %c15_i32_13 : i32 to vector<1x16x128xi32>
    %44 = arith.cmpi eq, %37, %43 : vector<1x16x128xi32>
    %45 = arith.select %44, %38, %39 : vector<1x16x128xi1>, vector<1x16x128xf32>
    %46 = arith.addf %42, %36 : vector<1x16x128xf32>
    %47 = arith.addf %46, %45 : vector<1x16x128xf32>
    %c0_14 = arith.constant 0 : index
    %c0_15 = arith.constant 0 : index
    %c0_16 = arith.constant 0 : index
    %48 = vector.load %arg2[%c0_14, %c0_15, %c0_16] : memref<1x16x128xf32, #tpu.memory_space<vmem>>, vector<1x16x128xf32>
    tpu.vector_store %arg2[%c0_14, %c0_15, %c0_16], %47 {strides = array<i32>} : memref<1x16x128xf32, #tpu.memory_space<vmem>>, vector<1x16x128xf32>,
    return
  }
  func.func @transform_0(%arg0: i32) -> (i32, i32, i32) {
    %c0_i32 = arith.constant 0 : i32
    %c0_i32_0 = arith.constant 0 : i32
    %c0_i32_1 = arith.constant 0 : i32
    return %arg0, %c0_i32, %c0_i32_0 : i32, i32, i32
  }
  func.func @transform_1(%arg0: i32) -> (i32, i32, i32) {
    %c0_i32 = arith.constant 0 : i32
    %c0_i32_0 = arith.constant 0 : i32
    %c0_i32_1 = arith.constant 0 : i32
    return %arg0, %c0_i32, %c0_i32_0 : i32, i32, i32
  }
}

</mosaic_0001>

<llo_original>
// kernel: tpu_custom_call.1
$region0: #{tpu_custom_call.1}
  #allocation0 [shape = 'u32[]', space=smem, size = 0x4, offset = 0x4, fixed_abs, tag = 'smem constant byte address 0x4 - core index']
  #allocation1 [shape = 'u32[144,128]{1,0:T(1,128)}', space=vmem, size = 0x12000, scoped, tag = 'internal scratch']
  %s0 = inlined_call_operand.hbm [shape: f32[1,16,128], index: 0, kind: input, shape index: {}]
  %s1 = inlined_call_operand.hbm [shape: f32[1,16,128], index: 1, kind: output, shape index: {}]
  %s2 = sld [smem:[#allocation0]]
  $region18: #{tpu_custom_call.1} parent=0
    _
  %s4 = ssub.s32 1, %s2
  %s5 = scalar_select 0, %s4, %s2
  $region1: #{tpu_custom_call.1} parent=0
    #allocation2 [shape = 'u8[8192]{0}', space=vmem, size = 0x2000, scoped, tag = 'input window, operand 0, single buffered']
    #allocation3 [shape = 's32[1]{0}', space=sflag, size = 0x4, scoped, tag = 'scoped memory for tpu_custom_call.1']
    #allocation4 [shape = 's32[1]{0}', space=sflag, size = 0x4, scoped, tag = 'scoped memory for tpu_custom_call.1']
    #allocation5 [shape = 'u8[8192]{0}', space=vmem, size = 0x2000, scoped, tag = 'output window, operand 0, single buffered']
    %6 = vsyncpa [#allocation3], 0
    %7 = vsyncpa [#allocation4], 0
    // Predicated region
    $region2: #{tpu_custom_call.1} parent=1 // pred_check
      _
    $region3: #{tpu_custom_call.1} parent=1 // pred_check_branch
      %9 = sbr.rel (0) target = $region5
    $region4: #{tpu_custom_call.1} parent=1 // pred_region
      %s11 = ssub.s32 256, 256
      %12 = vsyncadd [#allocation3], %s11
      %s13 = sshll.u32 [#allocation2], 4
      %s14 = int_to_ptr.vmem [resolvable:$true] %s13
      %19 = dma.hbm_to_vmem [thread:$0]  %s0, 256, %s14, [#allocation3], 128, 128, 8
    $region5: #{tpu_custom_call.1} parent=1 // pred_fallthru
      _
    // Predicated region
    $region6: #{tpu_custom_call.1} parent=1 // pred_check
      _
    $region7: #{tpu_custom_call.1} parent=1 // pred_check_branch
      %21 = sbr.rel (0) target = $region9
    $region8: #{tpu_custom_call.1} parent=1 // pred_region
      %22 = dma.done [#allocation3], 256
    $region9: #{tpu_custom_call.1} parent=1 // pred_fallthru
      _
    %v23 = vld [vmem:[#allocation2] sm:$0xff]
    %v24 = vld [vmem:[#allocation2 + $0x8] sm:$0xff]
    %v25 = vlaneseq
    %v26 = vand.u32 %v25, 127
    %vm27 = vcmp.lt.s32.totalorder %v26, 0
    %v28 = vsub.s32 0, %v26
    %v29 = vsel %vm27, %v28, %v26
    %v30 = vshrl.u32 %v29, 4
    %v31 = vand.u32 %v29, 15
    %v32 = vsub.s32 0, %v31
    %v33 = vsel %vm27, %v32, %v31
    %vm34 = vcmp.ne.s32.totalorder %v33, 0
    %vm35 = vcmp.lt.s32.totalorder %v33, 0
    %vm36 = vmand %vm35, %vm34
    %v37 = vadd.s32 %v33, 16
    %v38 = vsel %vm36, %v37, %v33
    %39 = vrot.lane.b32.xlu0 %v23, 1
    %v40 = vpop.permute.xlu0 %39
    %41 = vrot.lane.b32.xlu0 %v24, 1
    %v42 = vpop.permute.xlu0 %41
    %43 = vrot.lane.b32.xlu0 %v23, 127
    %v44 = vpop.permute.xlu0 %43
    %45 = vrot.lane.b32.xlu0 %v24, 127
    %v46 = vpop.permute.xlu0 %45
    %vm47 = vcmp.eq.s32.totalorder %v38, 0
    %v48 = vsel %vm47, %v44, %v40
    %v49 = vsel %vm47, %v46, %v42
    %vm50 = vcmp.eq.s32.totalorder %v38, 15
    %v51 = vsel %vm50, %v40, %v44
    %v52 = vsel %vm50, %v42, %v46
    %v53 = vadd.f32 %v48, %v51
    %v54 = vadd.f32 %v49, %v52
    %v55 = vmul.f32 %v53, 0.0751
    %v56 = vmul.f32 %v54, 0.0751
    %v57 = vmul.f32 %v23, 0.1238
    %v58 = vmul.f32 %v24, 0.1238
    %v59 = vadd.f32 %v55, %v57
    %v60 = vadd.f32 %v56, %v58
    %v61 = vmul.f32 %v53, 0.1238
    %v62 = vmul.f32 %v54, 0.1238
    %v63 = vmul.f32 %v23, 0.2042
    %v64 = vmul.f32 %v24, 0.2042
    %v65 = vadd.f32 %v61, %v63
    %v66 = vadd.f32 %v62, %v64
    %v67 = vlaneseq
    %v68 = vshrl.u32 %v67, 7
    %v69 = vadd.s32 %v68, 8
    %v70 = vrot.slane %v59, 7
    %v71 = vrot.slane %v60, 7
    %vm72 = vcmp.lt.s32.totalorder %v68, 1
    %v73 = vsel %vm72, %v70, %v71
    %v74 = vsel %vm72, %v71, %v70
    %v75 = vrot.slane %v59, 1
    %v76 = vrot.slane %v60, 1
    %vm77 = vcmp.lt.s32.totalorder %v68, 7
    %v78 = vsel %vm77, %v75, %v76
    %v79 = vsel %vm77, %v76, %v75
    %vm80 = vcmp.eq.s32.totalorder %v68, 0
    %vm81 = vcmp.eq.s32.totalorder %v69, 0
    %v82 = vsel %vm80, %v78, %v74
    %v83 = vsel %vm81, %v79, %v73
    %vm84 = vcmp.eq.s32.totalorder %v68, 15
    %vm85 = vcmp.eq.s32.totalorder %v69, 15
    %v86 = vsel %vm84, %v74, %v78
    %v87 = vsel %vm85, %v73, %v79
    %v88 = vadd.f32 %v82, %v65
    %v89 = vadd.f32 %v83, %v66
    %v90 = vadd.f32 %v88, %v86
    %v91 = vadd.f32 %v89, %v87
    %92 = vst [vmem:[#allocation5] sm:$0xff] %v90
    %93 = vst [vmem:[#allocation5 + $0x8] sm:$0xff] %v91
    // Predicated region
    $region10: #{tpu_custom_call.1} parent=1 // pred_check
      _
    $region11: #{tpu_custom_call.1} parent=1 // pred_check_branch
      %95 = sbr.rel (0) target = $region13
    $region12: #{tpu_custom_call.1} parent=1 // pred_region
      %s97 = ssub.s32 256, 256
      %98 = vsyncadd [#allocation4], %s97
      %s99 = sshll.u32 [#allocation5], 4
      %s100 = int_to_ptr.vmem [resolvable:$true] %s99
      %105 = dma.vmem_to_hbm [thread:$0]  %s100, 256, %s1, [#allocation4], 128, 128, 8
    $region13: #{tpu_custom_call.1} parent=1 // pred_fallthru
      _
    // Predicated region
    $region14: #{tpu_custom_call.1} parent=1 // pred_check
      _
    $region15: #{tpu_custom_call.1} parent=1 // pred_check_branch
      %107 = sbr.rel (0) target = $region17
    $region16: #{tpu_custom_call.1} parent=1 // pred_region
      %108 = dma.done [#allocation4], 256
    $region17: #{tpu_custom_call.1} parent=1 // pred_fallthru
      _
    %109 = vsyncpa [#allocation3], 1
    %110 = vsyncpa [#allocation4], 1

</llo_original>
